<compile_context>
chip_gen: v7x
topology: tpu7x:2x2x1
jax: 0.10.0
libtpu: 0.0.40
codegen_flags: <defaults>
</compile_context>

<pallas_src>
import jax
import jax.numpy as jnp
from jax.experimental import pallas as pl
from jax.experimental.pallas import tpu as pltpu

IN_FEATURES = 128
EMBED_DIM = 256

_MIN_TM = 256            # fills MXU rows (256-wide on v6e/v7x) and covers all dtype sublane tiles
_TARGET_STEPS = 4        # >= 2 grid steps per TensorCore on v7x (2 TCs share the parallel axis)
_PALLAS_MIN_ROWS = 512   # below this, per-call overhead dominates -> plain XLA dot


def _linear_kernel(x_ref, w_ref, b_ref, o_ref):
    # x_ref: (tm, 128), w_ref: (128, 256), b_ref: (1, 256), o_ref: (tm, 256)
    acc = jnp.dot(x_ref[...], w_ref[...], preferred_element_type=jnp.float32)
    o_ref[...] = (acc + b_ref[...].astype(jnp.float32)).astype(o_ref.dtype)


def _choose_tm(m_rows, tm_request):
    """Row tile: as large as requested, but keep >= _TARGET_STEPS grid steps when M allows."""
    tm_request = max(_MIN_TM, (tm_request // _MIN_TM) * _MIN_TM)
    tm_for_steps = max(_MIN_TM, ((m_rows // _TARGET_STEPS) // _MIN_TM) * _MIN_TM)
    return min(tm_request, tm_for_steps)


def _vmem_cap_bytes():
    """Generation-aware ceiling for vmem_limit_bytes (v7x has only 64 MiB VMEM per TC)."""
    try:
        cap = int(pltpu.get_tpu_info().vmem_capacity_bytes)
        return min(3 * cap // 4, 96 << 20)
    except Exception:
        return 48 << 20  # conservative: safe on v5e / v6e / v7x


def adjust_audio_forward(x, weight, bias, *, tm=4096):
    """AdjustAudio forward: y = x @ W + b.

    x: (..., 128) -> (..., EMBED_DIM).  weight: (128, EMBED_DIM) (== PyTorch W^T),
    bias: (EMBED_DIM,).  I/O dtype follows x; accumulation is always f32 on the MXU.
    """
    orig_shape = x.shape
    assert orig_shape[-1] == IN_FEATURES
    x2d = x.reshape(-1, IN_FEATURES)
    M = x2d.shape[0]

    # Tiny problems: pallas_call launch overhead dominates; XLA's fused dot is faster.
    if M < _PALLAS_MIN_ROWS:
        out = (
            jnp.dot(x2d, weight, preferred_element_type=jnp.float32)
            + bias.astype(jnp.float32)
        ).astype(x.dtype)
        return out.reshape(*orig_shape[:-1], EMBED_DIM)

    tm_eff = _choose_tm(M, tm)
    n_steps = pl.cdiv(M, tm_eff)  # ragged final block handled by Pallas masking; no pad/slice copies
    b2d = bias.reshape(1, EMBED_DIM)

    x_itemsize = jnp.dtype(x.dtype).itemsize
    w_itemsize = jnp.dtype(weight.dtype).itemsize
    # Double-buffered x + y blocks, plus W/b (counted double-buffered to be safe).
    block_bytes = (
        2 * tm_eff * (IN_FEATURES + EMBED_DIM) * x_itemsize
        + 2 * (IN_FEATURES + 1) * EMBED_DIM * w_itemsize
    )
    if block_bytes > (8 << 20):
        compiler_params = pltpu.CompilerParams(
            dimension_semantics=("parallel",),
            vmem_limit_bytes=min(block_bytes + (8 << 20), _vmem_cap_bytes()),
        )
    else:
        compiler_params = pltpu.CompilerParams(dimension_semantics=("parallel",))

    cost = pl.CostEstimate(
        flops=2 * M * IN_FEATURES * EMBED_DIM,
        transcendentals=0,
        bytes_accessed=(
            M * (IN_FEATURES + EMBED_DIM) * x_itemsize
            + (IN_FEATURES + 1) * EMBED_DIM * w_itemsize
        ),
    )

    out = pl.pallas_call(
        _linear_kernel,
        out_shape=jax.ShapeDtypeStruct((M, EMBED_DIM), x.dtype),
        grid_spec=pltpu.PrefetchScalarGridSpec(
            num_scalar_prefetch=0,
            grid=(n_steps,),
            in_specs=[
                pl.BlockSpec((tm_eff, IN_FEATURES), lambda i: (i, 0)),
                # Weight/bias are grid-invariant (constant index map) and stay VMEM-resident.
                # TODO(synk): pipeline_mode=pl.Buffered(1) would drop their second buffer
                # (~130 KiB saving); left at defaults to avoid depending on pipeline_mode support.
                pl.BlockSpec((IN_FEATURES, EMBED_DIM), lambda i: (0, 0)),
                pl.BlockSpec((1, EMBED_DIM), lambda i: (0, 0)),
            ],
            out_specs=pl.BlockSpec((tm_eff, EMBED_DIM), lambda i: (i, 0)),
        ),
        compiler_params=compiler_params,
        cost_estimate=cost,
    )(x2d, weight, b2d)

    return out.reshape(*orig_shape[:-1], EMBED_DIM)


def init_params(key, dtype=jnp.float32):
    """Deterministic init mirroring nn.Linear's default (uniform +/- 1/sqrt(fan_in))."""
    kw, kb = jax.random.split(key)
    bound = 1.0 / jnp.sqrt(float(IN_FEATURES))
    # Stored directly as (in_features, out_features) == W^T of PyTorch's layout.
    weight = jax.random.uniform(
        kw, (IN_FEATURES, EMBED_DIM), dtype=dtype, minval=-bound, maxval=bound
    )
    bias = jax.random.uniform(
        kb, (EMBED_DIM,), dtype=dtype, minval=-bound, maxval=bound
    )
    return weight, bias


if __name__ == "__main__":
    key = jax.random.PRNGKey(0)
    k_x, k_x2, k_x3, k_p = jax.random.split(key, 4)

    weight, bias = init_params(k_p)

    # 1) Tiny shape consistent with the module (batch=2, seq=8, features=128):
    #    exercises the small-M fused-dot fallback.
    x = jax.random.normal(k_x, (2, 8, IN_FEATURES), dtype=jnp.float32)
    y = jax.block_until_ready(adjust_audio_forward(x, weight, bias))
    ref = x @ weight + bias
    assert y.shape == (2, 8, EMBED_DIM)
    assert jnp.allclose(y, ref, atol=1e-4, rtol=1e-4)

    # 2) Pallas path with a ragged final block: 5*130 = 650 rows, tile 256 -> 3 steps.
    x2 = jax.random.normal(k_x2, (5, 130, IN_FEATURES), dtype=jnp.float32)
    y2 = jax.block_until_ready(adjust_audio_forward(x2, weight, bias))
    ref2 = x2 @ weight + bias
    assert y2.shape == (5, 130, EMBED_DIM)
    assert jnp.allclose(y2, ref2, atol=1e-4, rtol=1e-4)

    # 3) Pallas path with evenly dividing blocks: 4*256 = 1024 rows, tile 256 -> 4 steps.
    x3 = jax.random.normal(k_x3, (4, 256, IN_FEATURES), dtype=jnp.float32)
    y3 = jax.block_until_ready(adjust_audio_forward(x3, weight, bias))
    ref3 = x3 @ weight + bias
    assert y3.shape == (4, 256, EMBED_DIM)
    assert jnp.allclose(y3, ref3, atol=1e-4, rtol=1e-4)

    print("KERNEL_OK")
</pallas_src>

<mosaic_0001>
module attributes {stable_mosaic.version = 11 : i64} {
  func.func @_linear_kernel(%arg0: i32, %arg1: memref<256x128xf32, #tpu.memory_space<vmem>>, %arg2: memref<128x256xf32, #tpu.memory_space<vmem>>, %arg3: memref<1x256xf32, #tpu.memory_space<vmem>>, %arg4: memref<256x256xf32, #tpu.memory_space<vmem>>) attributes {dimension_semantics = [#tpu.dimension_semantics<parallel>], iteration_bounds = array<i64: 3>, scalar_prefetch = 0 : i64, scratch_operands = 0 : i64, tpu.core_type = #tpu.core_type<tc>, window_params = [{transform_indices = @transform_0, window_bounds = array<i64: 256, 128>}, {pipeline_mode = #tpu.pipeline_mode<synchronous>, transform_indices = @transform_1, window_bounds = array<i64: 128, 256>}, {pipeline_mode = #tpu.pipeline_mode<synchronous>, transform_indices = @transform_2, window_bounds = array<i64: 1, 256>}, {transform_indices = @transform_3, window_bounds = array<i64: 256, 256>}]} {
    %c0 = arith.constant 0 : index
    %c0_0 = arith.constant 0 : index
    %0 = vector.load %arg1[%c0, %c0_0] : memref<256x128xf32, #tpu.memory_space<vmem>>, vector<256x128xf32>
    %c0_1 = arith.constant 0 : index
    %c0_2 = arith.constant 0 : index
    %1 = vector.load %arg2[%c0_1, %c0_2] : memref<128x256xf32, #tpu.memory_space<vmem>>, vector<128x256xf32>
    %cst = arith.constant dense<0.000000e+00> : vector<256x256xf32>
    %2 = tpu.matmul %0, %1, %cst {dimension_numbers = #tpu.dot_dimension_numbers<[1], [0], [0], [1], [0, 0, 1, 1], [], []>} : vector<256x128xf32>, vector<128x256xf32>, vector<256x256xf32> -> vector<256x256xf32>
    %c0_3 = arith.constant 0 : index
    %c0_4 = arith.constant 0 : index
    %3 = vector.load %arg3[%c0_3, %c0_4] : memref<1x256xf32, #tpu.memory_space<vmem>>, vector<1x256xf32>
    %4 = vector.broadcast %3 : vector<1x256xf32> to vector<256x256xf32>
    %5 = arith.addf %2, %4 : vector<256x256xf32>
    %c0_5 = arith.constant 0 : index
    %c0_6 = arith.constant 0 : index
    %6 = vector.load %arg4[%c0_5, %c0_6] : memref<256x256xf32, #tpu.memory_space<vmem>>, vector<256x256xf32>
    tpu.vector_store %arg4[%c0_5, %c0_6], %5 {strides = array<i32>} : memref<256x256xf32, #tpu.memory_space<vmem>>, vector<256x256xf32>,
    return
  }
  func.func @transform_0(%arg0: i32) -> (i32, i32) {
    %c0_i32 = arith.constant 0 : i32
    %c0_i32_0 = arith.constant 0 : i32
    return %arg0, %c0_i32 : i32, i32
  }
  func.func @transform_1(%arg0: i32) -> (i32, i32) {
    %c0_i32 = arith.constant 0 : i32
    %c0_i32_0 = arith.constant 0 : i32
    %c0_i32_1 = arith.constant 0 : i32
    return %c0_i32, %c0_i32_0 : i32, i32
  }
  func.func @transform_2(%arg0: i32) -> (i32, i32) {
    %c0_i32 = arith.constant 0 : i32
    %c0_i32_0 = arith.constant 0 : i32
    %c0_i32_1 = arith.constant 0 : i32
    return %c0_i32, %c0_i32_0 : i32, i32
  }
  func.func @transform_3(%arg0: i32) -> (i32, i32) {
    %c0_i32 = arith.constant 0 : i32
    %c0_i32_0 = arith.constant 0 : i32
    return %arg0, %c0_i32 : i32, i32
  }
}

</mosaic_0001>

<llo_original>
// kernel: tpu_custom_call.1
$region0: #{tpu_custom_call.1}
  #allocation0 [shape = 'u32[]', space=smem, size = 0x4, offset = 0x4, fixed_abs, tag = 'smem constant byte address 0x4 - core index']
  #allocation1 [shape = 'u32[144,128]{1,0:T(1,128)}', space=vmem, size = 0x12000, scoped, tag = 'internal scratch']
  %s0 = inlined_call_operand.hbm [shape: f32[650,128], index: 0, kind: input, shape index: {}]
  %s1 = inlined_call_operand.hbm [shape: f32[128,256], index: 1, kind: input, shape index: {}]
  %s2 = inlined_call_operand.vmem [shape: f32[1,256], index: 2, kind: input, shape index: {}]
  %s3 = inlined_call_operand.hbm [shape: f32[650,256], index: 3, kind: output, shape index: {}]
  %s4 = sld [smem:[#allocation0]]
  $region53: #{tpu_custom_call.1} parent=0
    _
  %s6 = ssub.s32 1, %s4
  %s7 = scalar_select 0, %s6, %s4
  $region1: #{tpu_custom_call.1} parent=0
    #allocation2 [shape = 'u8[262144]{0}', space=vmem, size = 0x40000, scoped, tag = 'input window, operand 0']
    #allocation3 [shape = 's32[2]{0}', space=sflag, size = 0x8, scoped, tag = 'scoped memory for tpu_custom_call.1']
    #allocation4 [shape = 's32[2]{0}', space=sflag, size = 0x8, scoped, tag = 'scoped memory for tpu_custom_call.1']
    #allocation5 [shape = 'u8[131072]{0}', space=vmem, size = 0x20000, scoped, tag = 'input window, operand 1, single buffered']
    #allocation6 [shape = 's32[1]{0}', space=sflag, size = 0x4, scoped, tag = 'scoped memory for tpu_custom_call.1']
    #allocation7 [shape = 'u8[524288]{0}', space=vmem, size = 0x80000, scoped, tag = 'output window, operand 0']
    %8 = vsyncpa [#allocation3], 0
    %s9 = scalar_lea.sflag [#allocation3], 1
    %10 = vsyncpa %s9, 0
    %11 = vsyncpa [#allocation6], 0
    %12 = vsyncpa [#allocation4], 0
    %s13 = scalar_lea.sflag [#allocation4], 1
    %14 = vsyncpa %s13, 0
    loop: start=0, step=1, limit=5
    $region2: #{tpu_custom_call.1} parent=1 // loop_pre_header
      _
    $region3: #{tpu_custom_call.1} parent=1 // loop_header
      %s16 = sphi 0, %s20
      %p17 = scmp.ge.s32.totalorder %s16, 5
      %s26 = sphi 0, %s28
      %s29 = sphi 0, %s26
      %s30 = sphi 0, %s29
      %s46 = sphi 0, %s30
      %s50 = sphi 0, %s50
      %s52 = sphi 0, %s50
      %s53 = sphi 0, %s52
      %s67 = sphi 0, %s53
      %s71 = sphi 0, %s71
      %s73 = sphi 0, %s71
      %s74 = sphi 0, %s73
      %s88 = sphi 0, %s74
      %s94 = sphi 0, %s96
      %s97 = sphi 0, %s94
      %s98 = sphi 0, %s97
      %s114 = sphi 0, %s98
    $region4: #{tpu_custom_call.1} parent=1 // loop_header_branch
      %19 = sbr.rel (%p17) target = $region8
    $region5: #{tpu_custom_call.1} parent=1 // loop_body
      %s21 = ssub.s32 %s16, 1
      %s22 = ssub.s32 %s16, 2
      %s23 = sadd.s32 %s16, 1
      %s24 = ssub.s32 %s16, %s23
      %p25 = scmp.eq.s32.totalorder %s24, 0
      %s27 = sadd.s32 %s26, 1
      %s28 = scalar_select %p25, %s26, %s27
      %p31 = pneg %p25
      %p32 = scmp.eq.s32.totalorder %s16, 2
      %p33 = por %p31, %p32
      %p34 = scmp.ne.s32.totalorder %s26, %s29
      %p35 = scmp.eq.s32.totalorder %s16, 0
      %p36 = por %p34, %p35
      %p37 = scmp.ne.s32.totalorder %s26, %s29
      %p38 = scmp.eq.s32.totalorder %s21, 2
      %p39 = por %p37, %p38
      %p40 = scmp.ne.s32.totalorder %s29, %s30
      %p41 = scmp.eq.s32.totalorder %s21, 0
      %p42 = por %p40, %p41
      %p43 = scmp.ne.s32.totalorder %s29, %s30
      %p44 = scmp.eq.s32.totalorder %s22, 2
      %p45 = por %p43, %p44
      %p47 = scmp.ne.s32.totalorder %s30, %s46
      %p48 = scmp.eq.s32.totalorder %s22, 0
      %p49 = por %p47, %p48
      %s51 = sadd.s32 %s50, 1
      %p54 = scmp.eq.s32.totalorder %s16, 2
      %p55 = scmp.ne.s32.totalorder %s50, %s52
      %p56 = scmp.eq.s32.totalorder %s16, 0
      %p57 = por %p55, %p56
      %p58 = scmp.ne.s32.totalorder %s50, %s52
      %p59 = scmp.eq.s32.totalorder %s21, 2
      %p60 = por %p58, %p59
      %p61 = scmp.ne.s32.totalorder %s52, %s53
      %p62 = scmp.eq.s32.totalorder %s21, 0
      %p63 = por %p61, %p62
      %p64 = scmp.ne.s32.totalorder %s52, %s53
      %p65 = scmp.eq.s32.totalorder %s22, 2
      %p66 = por %p64, %p65
      %p68 = scmp.ne.s32.totalorder %s53, %s67
      %p69 = scmp.eq.s32.totalorder %s22, 0
      %p70 = por %p68, %p69
      %s72 = sadd.s32 %s71, 1
      %p75 = scmp.eq.s32.totalorder %s16, 2
      %p76 = scmp.ne.s32.totalorder %s71, %s73
      %p77 = scmp.eq.s32.totalorder %s16, 0
      %p78 = por %p76, %p77
      %p79 = scmp.ne.s32.totalorder %s71, %s73
      %p80 = scmp.eq.s32.totalorder %s21, 2
      %p81 = por %p79, %p80
      %p82 = scmp.ne.s32.totalorder %s73, %s74
      %p83 = scmp.eq.s32.totalorder %s21, 0
      %p84 = por %p82, %p83
      %p85 = scmp.ne.s32.totalorder %s73, %s74
      %p86 = scmp.eq.s32.totalorder %s22, 2
      %p87 = por %p85, %p86
      %p89 = scmp.ne.s32.totalorder %s74, %s88
      %p90 = scmp.eq.s32.totalorder %s22, 0
      %p91 = por %p89, %p90
      %s92 = ssub.s32 %s16, %s23
      %p93 = scmp.eq.s32.totalorder %s92, 0
      %s95 = sadd.s32 %s94, 1
      %s96 = scalar_select %p93, %s94, %s95
      %p99 = pneg %p93
      %p100 = scmp.eq.s32.totalorder %s16, 2
      %p101 = por %p99, %p100
      %p102 = scmp.ne.s32.totalorder %s94, %s97
      %p103 = scmp.eq.s32.totalorder %s16, 0
      %p104 = por %p102, %p103
      %p105 = scmp.ne.s32.totalorder %s94, %s97
      %p106 = scmp.eq.s32.totalorder %s21, 2
      %p107 = por %p105, %p106
      %p108 = scmp.ne.s32.totalorder %s97, %s98
      %p109 = scmp.eq.s32.totalorder %s21, 0
      %p110 = por %p108, %p109
      %p111 = scmp.ne.s32.totalorder %s97, %s98
      %p112 = scmp.eq.s32.totalorder %s22, 2
      %p113 = por %p111, %p112
      %p115 = scmp.ne.s32.totalorder %s98, %s114
      %p116 = scmp.eq.s32.totalorder %s22, 0
      %p117 = por %p115, %p116
      %p118 = scmp.le.s32.totalorder 1, %s16
      %p119 = scmp.lt.s32.totalorder %s16, 4
      %p120 = pnand %p118, %p119
      %p121 = pneg %p120
      // Predicated region
      $region9: #{tpu_custom_call.1} parent=5 // pred_check
        _
      $region10: #{tpu_custom_call.1} parent=5 // pred_check_branch
        %123 = sbr.rel (%p120) target = $region12
      $region11: #{tpu_custom_call.1} parent=5 // pred_region
        %s124 = ssub.s32 %s16, 1
        // Predicated region
        $region13: #{tpu_custom_call.1} parent=11 // pred_check
          %p125 = pneg %p63
        $region14: #{tpu_custom_call.1} parent=11 // pred_check_branch
          %127 = sbr.rel (%p125) target = $region16
        $region15: #{tpu_custom_call.1} parent=11 // pred_region
          %s129 = ssub.s32 4096, 4096
          %130 = vsyncadd [#allocation6], %s129
          %s131 = sshll.u32 [#allocation5], 4
          %s132 = int_to_ptr.vmem [resolvable:$true] %s131
          %137 = dma.hbm_to_vmem [thread:$0]  %s1, 4096, %s132, [#allocation6], 256, 256, 16
        $region16: #{tpu_custom_call.1} parent=11 // pred_fallthru
          _
        // Predicated region
        $region17: #{tpu_custom_call.1} parent=11 // pred_check
          %p138 = pneg %p84
        $region18: #{tpu_custom_call.1} parent=11 // pred_check_branch
          %140 = sbr.rel (%p138) target = $region20
        $region19: #{tpu_custom_call.1} parent=11 // pred_region
          _
        $region20: #{tpu_custom_call.1} parent=11 // pred_fallthru
          _
      $region12: #{tpu_custom_call.1} parent=5 // pred_fallthru
        _
      %p141 = scmp.lt.s32.totalorder %s16, 3
      // Predicated region
      $region21: #{tpu_custom_call.1} parent=5 // pred_check
        %p142 = pneg %p141
      $region22: #{tpu_custom_call.1} parent=5 // pred_check_branch
        %144 = sbr.rel (%p142) target = $region24
      $region23: #{tpu_custom_call.1} parent=5 // pred_region
        // Predicated region
        $region25: #{tpu_custom_call.1} parent=23 // pred_check
          %p145 = pneg %p36
        $region26: #{tpu_custom_call.1} parent=23 // pred_check_branch
          %147 = sbr.rel (%p145) target = $region28
        $region27: #{tpu_custom_call.1} parent=23 // pred_region
          %s148 = sand.u32 %s26, 1
          %s149 = scalar_lea.sflag [#allocation3], %s148
          %s150 = sand.u32 %s26, 1
          %s151 = smul.addr %s150, 256
          %s152 = scalar_lea.vmem [#allocation2], %s151
          %s153 = smul.u32 32, %s16
          %s154 = ssub.s32 82, %s153
          %p155 = scmp.lt.s32.totalorder %s154, 32
          %s156 = scalar_select %p155, %s154, 32
          %s157 = smul.u32 128, %s156
          %s159 = ssub.s32 4096, %s157
          %160 = vsyncadd %s149, %s159
          %p161 = scmp.ne.s32.totalorder 0, %s157
          %s162 = smul.addr %s153, 128
          %s163 = scalar_lea.hbm %s0, %s162
          %s164 = smul.u32 8, %s156
          %s165 = sshll.u32 %s152, 4
          %s166 = int_to_ptr.vmem [resolvable:$true] %s165
          %s167 = sshll.u32 %s164, 4
          %171 = dma.hbm_to_vmem [thread:$0]  (%p161), %s163, %s167, %s166, %s149, 128, 128, 8
        $region28: #{tpu_custom_call.1} parent=23 // pred_fallthru
          _
      $region24: #{tpu_custom_call.1} parent=5 // pred_fallthru
        _
      %p172 = scmp.le.s32.totalorder 1, %s16
      %p173 = scmp.lt.s32.totalorder %s16, 4
      %p174 = pnand %p172, %p173
      %p175 = pneg %p174
      // Predicated region
      $region29: #{tpu_custom_call.1} parent=5 // pred_check
        _
      $region30: #{tpu_custom_call.1} parent=5 // pred_check_branch
        %177 = sbr.rel (%p174) target = $region32
      $region31: #{tpu_custom_call.1} parent=5 // pred_region
        %s178 = ssub.s32 %s16, 1
        %s179 = sand.u32 %s29, 1
        %s180 = scalar_lea.sflag [#allocation3], %s179
        %s181 = sand.u32 %s29, 1
        %s182 = smul.addr %s181, 256
        %s183 = scalar_lea.vmem [#allocation2], %s182
        // Predicated region
        $region33: #{tpu_custom_call.1} parent=31 // pred_check
          %p184 = pneg %p42
        $region34: #{tpu_custom_call.1} parent=31 // pred_check_branch
          %186 = sbr.rel (%p184) target = $region36
        $region35: #{tpu_custom_call.1} parent=31 // pred_region
          %187 = dma.done %s180, 4096
        $region36: #{tpu_custom_call.1} parent=31 // pred_fallthru
          _
        // Predicated region
        $region37: #{tpu_custom_call.1} parent=31 // pred_check
          %p188 = pneg %p63
        $region38: #{tpu_custom_call.1} parent=31 // pred_check_branch
          %190 = sbr.rel (%p188) target = $region40
        $region39: #{tpu_custom_call.1} parent=31 // pred_region
          %191 = dma.done [#allocation6], 4096
        $region40: #{tpu_custom_call.1} parent=31 // pred_fallthru
          _
        %s192 = sand.u32 %s29, 1
        %s193 = scalar_lea.sflag [#allocation3], %s192
        %s194 = sand.u32 %s29, 1
        %s195 = smul.addr %s194, 256
        %s196 = scalar_lea.vmem [#allocation2], %s195
        %p197 = pneg %p42
        %p198 = pneg %p39
        %p199 = pneg %p63
        %p200 = pneg %p60
        %p201 = pneg %p84
        %p202 = pneg %p81
        %p203 = pneg %p110
        %p204 = pneg %p107
        %s205 = sand.u32 %s97, 1
        %s206 = scalar_lea.sflag [#allocation4], %s205
        %s207 = sand.u32 %s97, 1
        %s208 = smul.addr %s207, 512
        %s209 = scalar_lea.vmem [#allocation7], %s208
        %s210 = smul.u32 32, %s21
        %s211 = ssub.s32 82, %s210
        %p212 = scmp.lt.s32.totalorder %s211, 32
        %s213 = scalar_select %p212, %s211, 32
        %s214 = smul.u32 128, %s213
        %s215 = smul.u32 32, %s21
        %s216 = ssub.s32 82, %s215
        %p217 = scmp.lt.s32.totalorder %s216, 32
        %s218 = scalar_select %p217, %s216, 32
        %s219 = smul.u32 128, %s218
        %s220 = smul.u32 %s219, 2
        %v221 = vld [vmem:[%s183] sm:$0xff]
        %v222 = vld [vmem:[%s183 + $0x8] sm:$0xff]
        %v223 = vld [vmem:[%s183 + $0x10] sm:$0xff]
        %v224 = vld [vmem:[%s183 + $0x18] sm:$0xff]
        %v225 = vld [vmem:[%s183 + $0x20] sm:$0xff]
        %v226 = vld [vmem:[%s183 + $0x28] sm:$0xff]
        %v227 = vld [vmem:[%s183 + $0x30] sm:$0xff]
        %v228 = vld [vmem:[%s183 + $0x38] sm:$0xff]
        %v229 = vld [vmem:[%s183 + $0x40] sm:$0xff]
        %v230 = vld [vmem:[%s183 + $0x48] sm:$0xff]
        %v231 = vld [vmem:[%s183 + $0x50] sm:$0xff]
        %v232 = vld [vmem:[%s183 + $0x58] sm:$0xff]
        %v233 = vld [vmem:[%s183 + $0x60] sm:$0xff]
        %v234 = vld [vmem:[%s183 + $0x68] sm:$0xff]
        %v235 = vld [vmem:[%s183 + $0x70] sm:$0xff]
        %v236 = vld [vmem:[%s183 + $0x78] sm:$0xff]
        %v237 = vld [vmem:[%s183 + $0x80] sm:$0xff]
        %v238 = vld [vmem:[%s183 + $0x88] sm:$0xff]
        %v239 = vld [vmem:[%s183 + $0x90] sm:$0xff]
        %v240 = vld [vmem:[%s183 + $0x98] sm:$0xff]
        %v241 = vld [vmem:[%s183 + $0xa0] sm:$0xff]
        %v242 = vld [vmem:[%s183 + $0xa8] sm:$0xff]
        %v243 = vld [vmem:[%s183 + $0xb0] sm:$0xff]
        %v244 = vld [vmem:[%s183 + $0xb8] sm:$0xff]
        %v245 = vld [vmem:[%s183 + $0xc0] sm:$0xff]
        %v246 = vld [vmem:[%s183 + $0xc8] sm:$0xff]
        %v247 = vld [vmem:[%s183 + $0xd0] sm:$0xff]
        %v248 = vld [vmem:[%s183 + $0xd8] sm:$0xff]
        %v249 = vld [vmem:[%s183 + $0xe0] sm:$0xff]
        %v250 = vld [vmem:[%s183 + $0xe8] sm:$0xff]
        %v251 = vld [vmem:[%s183 + $0xf0] sm:$0xff]
        %v252 = vld [vmem:[%s183 + $0xf8] sm:$0xff]
        %v253 = vld [vmem:[#allocation5] sm:$0xff]
        %v254 = vld [vmem:[#allocation5 + $0x8] sm:$0xff]
        %v255 = vld [vmem:[#allocation5 + $0x10] sm:$0xff]
        %v256 = vld [vmem:[#allocation5 + $0x18] sm:$0xff]
        %v257 = vld [vmem:[#allocation5 + $0x20] sm:$0xff]
        %v258 = vld [vmem:[#allocation5 + $0x28] sm:$0xff]
        %v259 = vld [vmem:[#allocation5 + $0x30] sm:$0xff]
        %v260 = vld [vmem:[#allocation5 + $0x38] sm:$0xff]
        %v261 = vld [vmem:[#allocation5 + $0x40] sm:$0xff]
        %v262 = vld [vmem:[#allocation5 + $0x48] sm:$0xff]
        %v263 = vld [vmem:[#allocation5 + $0x50] sm:$0xff]
        %v264 = vld [vmem:[#allocation5 + $0x58] sm:$0xff]
        %v265 = vld [vmem:[#allocation5 + $0x60] sm:$0xff]
        %v266 = vld [vmem:[#allocation5 + $0x68] sm:$0xff]
        %v267 = vld [vmem:[#allocation5 + $0x70] sm:$0xff]
        %v268 = vld [vmem:[#allocation5 + $0x78] sm:$0xff]
        %v269 = vld [vmem:[#allocation5 + $0x80] sm:$0xff]
        %v270 = vld [vmem:[#allocation5 + $0x88] sm:$0xff]
        %v271 = vld [vmem:[#allocation5 + $0x90] sm:$0xff]
        %v272 = vld [vmem:[#allocation5 + $0x98] sm:$0xff]
        %v273 = vld [vmem:[#allocation5 + $0xa0] sm:$0xff]
        %v274 = vld [vmem:[#allocation5 + $0xa8] sm:$0xff]
        %v275 = vld [vmem:[#allocation5 + $0xb0] sm:$0xff]
        %v276 = vld [vmem:[#allocation5 + $0xb8] sm:$0xff]
        %v277 = vld [vmem:[#allocation5 + $0xc0] sm:$0xff]
        %v278 = vld [vmem:[#allocation5 + $0xc8] sm:$0xff]
        %v279 = vld [vmem:[#allocation5 + $0xd0] sm:$0xff]
        %v280 = vld [vmem:[#allocation5 + $0xd8] sm:$0xff]
        %v281 = vld [vmem:[#allocation5 + $0xe0] sm:$0xff]
        %v282 = vld [vmem:[#allocation5 + $0xe8] sm:$0xff]
        %v283 = vld [vmem:[#allocation5 + $0xf0] sm:$0xff]
        %v284 = vld [vmem:[#allocation5 + $0xf8] sm:$0xff]
        %v285 = vld [vmem:[%s2] sm:$0x3]
        %v287 = vlaneseq
        %v288 = vshrl.u32 %v287, 7
        %v289 = vsub.s32 0, %v288
        %v290 = vrot.slane %v285, %v289
        %v291 = vlaneseq
        %v292 = vshrl.u32 %v291, 7
        %v293 = vsub.s32 1, %v292
        %v294 = vrot.slane %v285, %v293
        %297 = vmatprep.subr.mxu0 %v254
        %298 = vmatpush1.msra.mxu0 %v253
        %299 = vmatprep.subr.mxu0 %v256
        %300 = vmatpush1.msra.mxu0 %v255
        %301 = vmatprep.subr.mxu0 %v258
        %302 = vmatpush1.msra.mxu0 %v257
        %303 = vmatprep.subr.mxu0 %v260
        %304 = vmatpush1.msra.mxu0 %v259
        %305 = vmatprep.subr.mxu0 %v262
        %306 = vmatpush1.msra.mxu0 %v261
        %307 = vmatprep.subr.mxu0 %v264
        %308 = vmatpush1.msra.mxu0 %v263
        %309 = vmatprep.subr.mxu0 %v266
        %310 = vmatpush1.msra.mxu0 %v265
        %311 = vmatprep.subr.mxu0 %v268
        %312 = vmatpush1.msra.mxu0 %v267
        %313 = vmatprep.subr.mxu0 %v270
        %314 = vmatpush1.msra.mxu0 %v269
        %315 = vmatprep.subr.mxu0 %v272
        %316 = vmatpush1.msra.mxu0 %v271
        %317 = vmatprep.subr.mxu0 %v274
        %318 = vmatpush1.msra.mxu0 %v273
        %319 = vmatprep.subr.mxu0 %v276
        %320 = vmatpush1.msra.mxu0 %v275
        %321 = vmatprep.subr.mxu0 %v278
        %322 = vmatpush1.msra.mxu0 %v277
        %323 = vmatprep.subr.mxu0 %v280
        %324 = vmatpush1.msra.mxu0 %v279
        %325 = vmatprep.subr.mxu0 %v282
        %326 = vmatpush1.msra.mxu0 %v281
        %327 = vmatprep.subr.mxu0 %v284
        %328 = vmatpush1.msra.mxu0 %v283
        %329 = vmatprep.subr.mxu0 0.0
        %330 = vmatpush1.msra.mxu0 0.0
        %331 = vmatprep.subr.mxu0 0.0
        %332 = vmatpush1.msra.mxu0 0.0
        %333 = vmatprep.subr.mxu0 0.0
        %334 = vmatpush1.msra.mxu0 0.0
        %335 = vmatprep.subr.mxu0 0.0
        %336 = vmatpush1.msra.mxu0 0.0
        %337 = vmatprep.subr.mxu0 0.0
        %338 = vmatpush1.msra.mxu0 0.0
        %339 = vmatprep.subr.mxu0 0.0
        %340 = vmatpush1.msra.mxu0 0.0
        %341 = vmatprep.subr.mxu0 0.0
        %342 = vmatpush1.msra.mxu0 0.0
        %343 = vmatprep.subr.mxu0 0.0
        %344 = vmatpush1.msra.mxu0 0.0
        %345 = vmatprep.subr.mxu0 0.0
        %346 = vmatpush1.msra.mxu0 0.0
        %347 = vmatprep.subr.mxu0 0.0
        %348 = vmatpush1.msra.mxu0 0.0
        %349 = vmatprep.subr.mxu0 0.0
        %350 = vmatpush1.msra.mxu0 0.0
        %351 = vmatprep.subr.mxu0 0.0
        %352 = vmatpush1.msra.mxu0 0.0
        %353 = vmatprep.subr.mxu0 0.0
        %354 = vmatpush1.msra.mxu0 0.0
        %355 = vmatprep.subr.mxu0 0.0
        %356 = vmatpush1.msra.mxu0 0.0
        %357 = vmatprep.subr.mxu0 0.0
        %358 = vmatpush1.msra.mxu0 0.0
        %359 = vmatprep.subr.mxu0 0.0
        %360 = vmatpush1.msra.mxu0 0.0
        %361 = vmatprep.mubr.f32.mxu0 0.0
        %362 = vmatmul.mubr.f32.gmra.mrb[0].mxu0 %v221
        %v363 = vpop.f32.mrb[0].mxu0
        %v364 = vadd.f32 %v290, %v363
        %v365 = vpop.f32.mrb[0].mxu0
        %v366 = vadd.f32 %v294, %v365
        %367 = vmatprep.mubr.f32.mxu0 0.0
        %368 = vmatmul.mubr.f32.gmra.mrb[0].mxu0 %v222
        %v369 = vpop.f32.mrb[0].mxu0
        %v370 = vadd.f32 %v290, %v369
        %v371 = vpop.f32.mrb[0].mxu0
        %v372 = vadd.f32 %v294, %v371
        %373 = vmatprep.mubr.f32.mxu0 0.0
        %374 = vmatmul.mubr.f32.gmra.mrb[0].mxu0 %v223
        %v375 = vpop.f32.mrb[0].mxu0
        %v376 = vadd.f32 %v290, %v375
        %v377 = vpop.f32.mrb[0].mxu0
        %v378 = vadd.f32 %v294, %v377
        %379 = vmatprep.mubr.f32.mxu0 0.0
        %380 = vmatmul.mubr.f32.gmra.mrb[0].mxu0 %v224
        %v381 = vpop.f32.mrb[0].mxu0
        %v382 = vadd.f32 %v290, %v381
        %v383 = vpop.f32.mrb[0].mxu0
        %v384 = vadd.f32 %v294, %v383
        %385 = vmatprep.mubr.f32.mxu0 0.0
        %386 = vmatmul.mubr.f32.gmra.mrb[0].mxu0 %v225
        %v387 = vpop.f32.mrb[0].mxu0
        %v388 = vadd.f32 %v290, %v387
        %v389 = vpop.f32.mrb[0].mxu0
        %v390 = vadd.f32 %v294, %v389
        %391 = vmatprep.mubr.f32.mxu0 0.0
        %392 = vmatmul.mubr.f32.gmra.mrb[0].mxu0 %v226
        %v393 = vpop.f32.mrb[0].mxu0
        %v394 = vadd.f32 %v290, %v393
        %v395 = vpop.f32.mrb[0].mxu0
        %v396 = vadd.f32 %v294, %v395
        %397 = vmatprep.mubr.f32.mxu0 0.0
        %398 = vmatmul.mubr.f32.gmra.mrb[0].mxu0 %v227
        %v399 = vpop.f32.mrb[0].mxu0
        %v400 = vadd.f32 %v290, %v399
        %v401 = vpop.f32.mrb[0].mxu0
        %v402 = vadd.f32 %v294, %v401
        %403 = vmatprep.mubr.f32.mxu0 0.0
        %404 = vmatmul.mubr.f32.gmra.mrb[0].mxu0 %v228
        %v405 = vpop.f32.mrb[0].mxu0
        %v406 = vadd.f32 %v290, %v405
        %v407 = vpop.f32.mrb[0].mxu0
        %v408 = vadd.f32 %v294, %v407
        %409 = vmatprep.mubr.f32.mxu0 0.0
        %410 = vmatmul.mubr.f32.gmra.mrb[0].mxu0 %v229
        %v411 = vpop.f32.mrb[0].mxu0
        %v412 = vadd.f32 %v290, %v411
        %v413 = vpop.f32.mrb[0].mxu0
        %v414 = vadd.f32 %v294, %v413
        %415 = vmatprep.mubr.f32.mxu0 0.0
        %416 = vmatmul.mubr.f32.gmra.mrb[0].mxu0 %v230
        %v417 = vpop.f32.mrb[0].mxu0
        %v418 = vadd.f32 %v290, %v417
        %v419 = vpop.f32.mrb[0].mxu0
        %v420 = vadd.f32 %v294, %v419
        %421 = vmatprep.mubr.f32.mxu0 0.0
        %422 = vmatmul.mubr.f32.gmra.mrb[0].mxu0 %v231
        %v423 = vpop.f32.mrb[0].mxu0
        %v424 = vadd.f32 %v290, %v423
        %v425 = vpop.f32.mrb[0].mxu0
        %v426 = vadd.f32 %v294, %v425
        %427 = vmatprep.mubr.f32.mxu0 0.0
        %428 = vmatmul.mubr.f32.gmra.mrb[0].mxu0 %v232
        %v429 = vpop.f32.mrb[0].mxu0
        %v430 = vadd.f32 %v290, %v429
        %v431 = vpop.f32.mrb[0].mxu0
        %v432 = vadd.f32 %v294, %v431
        %433 = vmatprep.mubr.f32.mxu0 0.0
        %434 = vmatmul.mubr.f32.gmra.mrb[0].mxu0 %v233
        %v435 = vpop.f32.mrb[0].mxu0
        %v436 = vadd.f32 %v290, %v435
        %v437 = vpop.f32.mrb[0].mxu0
        %v438 = vadd.f32 %v294, %v437
        %439 = vmatprep.mubr.f32.mxu0 0.0
        %440 = vmatmul.mubr.f32.gmra.mrb[0].mxu0 %v234
        %v441 = vpop.f32.mrb[0].mxu0
        %v442 = vadd.f32 %v290, %v441
        %v443 = vpop.f32.mrb[0].mxu0
        %v444 = vadd.f32 %v294, %v443
        %445 = vmatprep.mubr.f32.mxu0 0.0
        %446 = vmatmul.mubr.f32.gmra.mrb[0].mxu0 %v235
        %v447 = vpop.f32.mrb[0].mxu0
        %v448 = vadd.f32 %v290, %v447
        %v449 = vpop.f32.mrb[0].mxu0
        %v450 = vadd.f32 %v294, %v449
        %451 = vmatprep.mubr.f32.mxu0 0.0
        %452 = vmatmul.mubr.f32.gmra.mrb[0].mxu0 %v236
        %v453 = vpop.f32.mrb[0].mxu0
        %v454 = vadd.f32 %v290, %v453
        %v455 = vpop.f32.mrb[0].mxu0
        %v456 = vadd.f32 %v294, %v455
        %457 = vmatprep.mubr.f32.mxu0 0.0
        %458 = vmatmul.mubr.f32.gmra.mrb[0].mxu0 %v237
        %v459 = vpop.f32.mrb[0].mxu0
        %v460 = vadd.f32 %v290, %v459
        %v461 = vpop.f32.mrb[0].mxu0
        %v462 = vadd.f32 %v294, %v461
        %463 = vmatprep.mubr.f32.mxu0 0.0
        %464 = vmatmul.mubr.f32.gmra.mrb[0].mxu0 %v238
        %v465 = vpop.f32.mrb[0].mxu0
        %v466 = vadd.f32 %v290, %v465
        %v467 = vpop.f32.mrb[0].mxu0
        %v468 = vadd.f32 %v294, %v467
        %469 = vmatprep.mubr.f32.mxu0 0.0
        %470 = vmatmul.mubr.f32.gmra.mrb[0].mxu0 %v239
        %v471 = vpop.f32.mrb[0].mxu0
        %v472 = vadd.f32 %v290, %v471
        %v473 = vpop.f32.mrb[0].mxu0
        %v474 = vadd.f32 %v294, %v473
        %475 = vmatprep.mubr.f32.mxu0 0.0
        %476 = vmatmul.mubr.f32.gmra.mrb[0].mxu0 %v240
        %v477 = vpop.f32.mrb[0].mxu0
        %v478 = vadd.f32 %v290, %v477
        %v479 = vpop.f32.mrb[0].mxu0
        %v480 = vadd.f32 %v294, %v479
        %481 = vmatprep.mubr.f32.mxu0 0.0
        %482 = vmatmul.mubr.f32.gmra.mrb[0].mxu0 %v241
        %v483 = vpop.f32.mrb[0].mxu0
        %v484 = vadd.f32 %v290, %v483
        %v485 = vpop.f32.mrb[0].mxu0
        %v486 = vadd.f32 %v294, %v485
        %487 = vmatprep.mubr.f32.mxu0 0.0
        %488 = vmatmul.mubr.f32.gmra.mrb[0].mxu0 %v242
        %v489 = vpop.f32.mrb[0].mxu0
        %v490 = vadd.f32 %v290, %v489
        %v491 = vpop.f32.mrb[0].mxu0
        %v492 = vadd.f32 %v294, %v491
        %493 = vmatprep.mubr.f32.mxu0 0.0
        %494 = vmatmul.mubr.f32.gmra.mrb[0].mxu0 %v243
        %v495 = vpop.f32.mrb[0].mxu0
        %v496 = vadd.f32 %v290, %v495
        %v497 = vpop.f32.mrb[0].mxu0
        %v498 = vadd.f32 %v294, %v497
        %499 = vmatprep.mubr.f32.mxu0 0.0
        %500 = vmatmul.mubr.f32.gmra.mrb[0].mxu0 %v244
        %v501 = vpop.f32.mrb[0].mxu0
        %v502 = vadd.f32 %v290, %v501
        %v503 = vpop.f32.mrb[0].mxu0
        %v504 = vadd.f32 %v294, %v503
        %505 = vmatprep.mubr.f32.mxu0 0.0
        %506 = vmatmul.mubr.f32.gmra.mrb[0].mxu0 %v245
        %v507 = vpop.f32.mrb[0].mxu0
        %v508 = vadd.f32 %v290, %v507
        %v509 = vpop.f32.mrb[0].mxu0
        %v510 = vadd.f32 %v294, %v509
        %511 = vmatprep.mubr.f32.mxu0 0.0
        %512 = vmatmul.mubr.f32.gmra.mrb[0].mxu0 %v246
        %v513 = vpop.f32.mrb[0].mxu0
        %v514 = vadd.f32 %v290, %v513
        %v515 = vpop.f32.mrb[0].mxu0
        %v516 = vadd.f32 %v294, %v515
        %517 = vmatprep.mubr.f32.mxu0 0.0
        %518 = vmatmul.mubr.f32.gmra.mrb[0].mxu0 %v247
        %v519 = vpop.f32.mrb[0].mxu0
        %v520 = vadd.f32 %v290, %v519
        %v521 = vpop.f32.mrb[0].mxu0
        %v522 = vadd.f32 %v294, %v521
        %523 = vmatprep.mubr.f32.mxu0 0.0
        %524 = vmatmul.mubr.f32.gmra.mrb[0].mxu0 %v248
        %v525 = vpop.f32.mrb[0].mxu0
        %v526 = vadd.f32 %v290, %v525
        %v527 = vpop.f32.mrb[0].mxu0
        %v528 = vadd.f32 %v294, %v527
        %529 = vmatprep.mubr.f32.mxu0 0.0
        %530 = vmatmul.mubr.f32.gmra.mrb[0].mxu0 %v249
        %v531 = vpop.f32.mrb[0].mxu0
        %v532 = vadd.f32 %v290, %v531
        %v533 = vpop.f32.mrb[0].mxu0
        %v534 = vadd.f32 %v294, %v533
        %535 = vmatprep.mubr.f32.mxu0 0.0
        %536 = vmatmul.mubr.f32.gmra.mrb[0].mxu0 %v250
        %v537 = vpop.f32.mrb[0].mxu0
        %v538 = vadd.f32 %v290, %v537
        %v539 = vpop.f32.mrb[0].mxu0
        %v540 = vadd.f32 %v294, %v539
        %541 = vmatprep.mubr.f32.mxu0 0.0
        %542 = vmatmul.mubr.f32.gmra.mrb[0].mxu0 %v251
        %v543 = vpop.f32.mrb[0].mxu0
        %v544 = vadd.f32 %v290, %v543
        %v545 = vpop.f32.mrb[0].mxu0
        %v546 = vadd.f32 %v294, %v545
        %547 = vmatprep.mubr.f32.mxu0 0.0
        %548 = vmatmul.mubr.f32.gmra.mrb[0].mxu0 %v252
        %v549 = vpop.f32.mrb[0].mxu0
        %v550 = vadd.f32 %v290, %v549
        %v551 = vpop.f32.mrb[0].mxu0
        %v552 = vadd.f32 %v294, %v551
        %553 = vdwg.mxu0
        %554 = vst [vmem:[%s209] sm:$0xff] %v364
        %555 = vst [vmem:[%s209 + $0x8] sm:$0xff] %v366
        %556 = vst [vmem:[%s209 + $0x10] sm:$0xff] %v370
        %557 = vst [vmem:[%s209 + $0x18] sm:$0xff] %v372
        %558 = vst [vmem:[%s209 + $0x20] sm:$0xff] %v376
        %559 = vst [vmem:[%s209 + $0x28] sm:$0xff] %v378
        %560 = vst [vmem:[%s209 + $0x30] sm:$0xff] %v382
        %561 = vst [vmem:[%s209 + $0x38] sm:$0xff] %v384
        %562 = vst [vmem:[%s209 + $0x40] sm:$0xff] %v388
        %563 = vst [vmem:[%s209 + $0x48] sm:$0xff] %v390
        %564 = vst [vmem:[%s209 + $0x50] sm:$0xff] %v394
        %565 = vst [vmem:[%s209 + $0x58] sm:$0xff] %v396
        %566 = vst [vmem:[%s209 + $0x60] sm:$0xff] %v400
        %567 = vst [vmem:[%s209 + $0x68] sm:$0xff] %v402
        %568 = vst [vmem:[%s209 + $0x70] sm:$0xff] %v406
        %569 = vst [vmem:[%s209 + $0x78] sm:$0xff] %v408
        %570 = vst [vmem:[%s209 + $0x80] sm:$0xff] %v412
        %571 = vst [vmem:[%s209 + $0x88] sm:$0xff] %v414
        %572 = vst [vmem:[%s209 + $0x90] sm:$0xff] %v418
        %573 = vst [vmem:[%s209 + $0x98] sm:$0xff] %v420
        %574 = vst [vmem:[%s209 + $0xa0] sm:$0xff] %v424
        %575 = vst [vmem:[%s209 + $0xa8] sm:$0xff] %v426
        %576 = vst [vmem:[%s209 + $0xb0] sm:$0xff] %v430
        %577 = vst [vmem:[%s209 + $0xb8] sm:$0xff] %v432
        %578 = vst [vmem:[%s209 + $0xc0] sm:$0xff] %v436
        %579 = vst [vmem:[%s209 + $0xc8] sm:$0xff] %v438
        %580 = vst [vmem:[%s209 + $0xd0] sm:$0xff] %v442
        %581 = vst [vmem:[%s209 + $0xd8] sm:$0xff] %v444
        %582 = vst [vmem:[%s209 + $0xe0] sm:$0xff] %v448
        %583 = vst [vmem:[%s209 + $0xe8] sm:$0xff] %v450
        %584 = vst [vmem:[%s209 + $0xf0] sm:$0xff] %v454
        %585 = vst [vmem:[%s209 + $0xf8] sm:$0xff] %v456
        %586 = vst [vmem:[%s209 + $0x100] sm:$0xff] %v460
        %587 = vst [vmem:[%s209 + $0x108] sm:$0xff] %v462
        %588 = vst [vmem:[%s209 + $0x110] sm:$0xff] %v466
        %589 = vst [vmem:[%s209 + $0x118] sm:$0xff] %v468
        %590 = vst [vmem:[%s209 + $0x120] sm:$0xff] %v472
        %591 = vst [vmem:[%s209 + $0x128] sm:$0xff] %v474
        %592 = vst [vmem:[%s209 + $0x130] sm:$0xff] %v478
        %593 = vst [vmem:[%s209 + $0x138] sm:$0xff] %v480
        %594 = vst [vmem:[%s209 + $0x140] sm:$0xff] %v484
        %595 = vst [vmem:[%s209 + $0x148] sm:$0xff] %v486
        %596 = vst [vmem:[%s209 + $0x150] sm:$0xff] %v490
        %597 = vst [vmem:[%s209 + $0x158] sm:$0xff] %v492
        %598 = vst [vmem:[%s209 + $0x160] sm:$0xff] %v496
        %599 = vst [vmem:[%s209 + $0x168] sm:$0xff] %v498
        %600 = vst [vmem:[%s209 + $0x170] sm:$0xff] %v502
        %601 = vst [vmem:[%s209 + $0x178] sm:$0xff] %v504
        %602 = vst [vmem:[%s209 + $0x180] sm:$0xff] %v508
        %603 = vst [vmem:[%s209 + $0x188] sm:$0xff] %v510
        %604 = vst [vmem:[%s209 + $0x190] sm:$0xff] %v514
        %605 = vst [vmem:[%s209 + $0x198] sm:$0xff] %v516
        %606 = vst [vmem:[%s209 + $0x1a0] sm:$0xff] %v520
        %607 = vst [vmem:[%s209 + $0x1a8] sm:$0xff] %v522
        %608 = vst [vmem:[%s209 + $0x1b0] sm:$0xff] %v526
        %609 = vst [vmem:[%s209 + $0x1b8] sm:$0xff] %v528
        %610 = vst [vmem:[%s209 + $0x1c0] sm:$0xff] %v532
        %611 = vst [vmem:[%s209 + $0x1c8] sm:$0xff] %v534
        %612 = vst [vmem:[%s209 + $0x1d0] sm:$0xff] %v538
        %613 = vst [vmem:[%s209 + $0x1d8] sm:$0xff] %v540
        %614 = vst [vmem:[%s209 + $0x1e0] sm:$0xff] %v544
        %615 = vst [vmem:[%s209 + $0x1e8] sm:$0xff] %v546
        %616 = vst [vmem:[%s209 + $0x1f0] sm:$0xff] %v550
        %617 = vst [vmem:[%s209 + $0x1f8] sm:$0xff] %v552
        %s618 = sand.u32 %s97, 1
        %s619 = scalar_lea.sflag [#allocation4], %s618
        %s620 = sand.u32 %s97, 1
        %s621 = smul.addr %s620, 512
        %s622 = scalar_lea.vmem [#allocation7], %s621
        // Predicated region
        $region41: #{tpu_custom_call.1} parent=31 // pred_check
          %p623 = pneg %p107
        $region42: #{tpu_custom_call.1} parent=31 // pred_check_branch
          %625 = sbr.rel (%p623) target = $region44
        $region43: #{tpu_custom_call.1} parent=31 // pred_region
          %s626 = smul.u32 32, %s21
          %s627 = ssub.s32 82, %s626
          %p628 = scmp.lt.s32.totalorder %s627, 32
          %s629 = scalar_select %p628, %s627, 32
          %s630 = smul.u32 128, %s629
          %s631 = smul.u32 %s630, 2
          %s633 = ssub.s32 8192, %s631
          %634 = vsyncadd %s619, %s633
          %p635 = scmp.ne.s32.totalorder 0, %s631
          %s636 = smul.addr %s626, 2
          %s637 = smul.addr %s636, 128
          %s638 = scalar_lea.hbm %s3, %s637
          %s639 = smul.u32 16, %s629
          %s640 = sshll.u32 %s622, 4
          %s641 = int_to_ptr.vmem [resolvable:$true] %s640
          %s642 = sshll.u32 %s639, 4
          %646 = dma.vmem_to_hbm [thread:$0]  (%p635), %s641, %s642, %s638, %s619, 256, 256, 16
        $region44: #{tpu_custom_call.1} parent=31 // pred_fallthru
          _
      $region32: #{tpu_custom_call.1} parent=5 // pred_fallthru
        _
      %p647 = scmp.le.s32.totalorder 2, %s16
      // Predicated region
      $region45: #{tpu_custom_call.1} parent=5 // pred_check
        %p648 = pneg %p647
      $region46: #{tpu_custom_call.1} parent=5 // pred_check_branch
        %650 = sbr.rel (%p648) target = $region48
      $region47: #{tpu_custom_call.1} parent=5 // pred_region
        %s651 = ssub.s32 %s16, 2
        // Predicated region
        $region49: #{tpu_custom_call.1} parent=47 // pred_check
          %p652 = pneg %p113
        $region50: #{tpu_custom_call.1} parent=47 // pred_check_branch
          %654 = sbr.rel (%p652) target = $region52
        $region51: #{tpu_custom_call.1} parent=47 // pred_region
          %s655 = sand.u32 %s98, 1
          %s656 = scalar_lea.sflag [#allocation4], %s655
          %s657 = sand.u32 %s98, 1
          %s658 = smul.addr %s657, 512
          %s659 = scalar_lea.vmem [#allocation7], %s658
          %660 = dma.done %s656, 8192
        $region52: #{tpu_custom_call.1} parent=47 // pred_fallthru
          _
      $region48: #{tpu_custom_call.1} parent=5 // pred_fallthru
        _
    $region6: #{tpu_custom_call.1} parent=1 // loop_footer
      %s20 = sadd.s32 1, %s16
    $region7: #{tpu_custom_call.1} parent=1 // loop_footer_branch
      %15 = sbr.rel target = $region3
    $region8: #{tpu_custom_call.1} parent=1 // loop_exit
      _
    %661 = vsyncpa [#allocation3], 1
    %s662 = scalar_lea.sflag [#allocation3], 1
    %663 = vsyncpa %s662, 1
    %664 = vsyncpa [#allocation6], 1
    %665 = vsyncpa [#allocation4], 1
    %s666 = scalar_lea.sflag [#allocation4], 1
    %667 = vsyncpa %s666, 1

</llo_original>
